<compile_context>
chip_gen: v5e
topology: v5e:2x2
jax: 0.10.0
libtpu: 0.0.40
codegen_flags: <defaults>
</compile_context>

<pallas_src>
import math

import jax
import jax.numpy as jnp
from jax.experimental import pallas as pl
from jax.experimental.pallas import tpu as pltpu

_LANE = 128
_ROW_ALIGN = 16                       # bf16 sublane packing: (16, 128) min tile
_TINY_BATCH = 32                      # <= this -> single grid step
_DEFAULT_BLOCK_B = 1024               # batch-tile cap (review: 1024-2048)
_VMEM_BUDGET = 40 * 1024 * 1024       # conservative; fits v7x 64 MiB physical
_VMEM_LIMIT_FLOOR = 32 * 1024 * 1024
_VMEM_LIMIT_CAP = 56 * 1024 * 1024


def _round_up(n, m):
    return ((n + m - 1) // m) * m


def _make_mlp_kernel(relu_flags, softmax, valid_out, padded_out):
    """Build a fused MLP kernel body.

    relu_flags[i] == True  -> layer i is followed by ReLU (hidden layers)
    relu_flags[i] == False -> plain linear (output head)
    valid_out / padded_out -> real vs lane-padded output width (softmax mask).
    """
    num_linear = len(relu_flags)

    def kernel(x_ref, *refs):
        # refs = (w0, b0, w1, b1, ..., w_{L-1}, b_{L-1}, out_ref)
        out_ref = refs[-1]
        h = x_ref[...]                          # bf16 activations straight off HBM
        for li in range(num_linear):
            w = refs[2 * li][...]               # bf16 weights -> MXU bf16 path
            b = refs[2 * li + 1][...]           # f32 bias
            lhs = h if h.dtype == jnp.bfloat16 else h.astype(jnp.bfloat16)
            h = jnp.dot(lhs, w, preferred_element_type=jnp.float32) + b
            if relu_flags[li]:
                h = jnp.maximum(h, 0.0)         # f32 VPU elementwise (v5e-safe)
        if softmax:
            if valid_out < padded_out:
                # Mask lane-padded columns so they don't pollute the softmax.
                col = jax.lax.broadcasted_iota(jnp.int32, h.shape, 1)
                h = jnp.where(col < valid_out, h, -jnp.inf)
            m = jnp.max(h, axis=-1, keepdims=True)
            e = jnp.exp(h - m)
            # approx reciprocal -> EUP slot; rows normalized to ~1e-3.
            h = e * pl.reciprocal(jnp.sum(e, axis=-1, keepdims=True), approx=True)
        out_ref[...] = h.astype(out_ref.dtype)  # bf16 lane-dense writeback

    return kernel


def _vmem_bytes(blk, in_dim_p, out_dim_p, layer_dims, weight_buffers):
    """Rough VMEM footprint (bytes) of one pipelined step at batch tile blk."""
    x_bytes = 2 * blk * in_dim_p * 2             # bf16 input block, double-buffered
    o_bytes = 2 * blk * out_dim_p * 2            # bf16 output block, double-buffered
    w_bytes = sum(weight_buffers * (ki * ko * 2 + ko * 4) for ki, ko in layer_dims)
    widest = max(ko for _, ko in layer_dims)
    act_bytes = 2 * blk * widest * 4             # a couple of live f32 intermediates
    return x_bytes + o_bytes + w_bytes + act_bytes


def _choose_block(batch, in_dim_p, out_dim_p, layer_dims, block_b_cap, weight_buffers):
    b16 = _round_up(max(batch, _ROW_ALIGN), _ROW_ALIGN)
    if batch <= _TINY_BATCH:
        # Launch-bound regardless of tiling; single step over the padded batch.
        return b16
    blk = min(_round_up(block_b_cap, _ROW_ALIGN), b16)
    if blk >= b16:
        # Batch would fit in one tile: split into >=2 steps so the "parallel"
        # batch axis shards across both TensorCores on v7x.
        blk = _round_up(pl.cdiv(b16, 2), _ROW_ALIGN)
    # Cap the tile so the pipelined working set stays inside the VMEM budget
    # (matters for wide flattened state shapes; v7x has only 64 MiB VMEM).
    while blk > _ROW_ALIGN and _vmem_bytes(
            blk, in_dim_p, out_dim_p, layer_dims, weight_buffers) > _VMEM_BUDGET:
        blk = max(_ROW_ALIGN, _round_up(blk // 2, _ROW_ALIGN))
    return blk


def mlp_forward(x, params, relu_flags, *, softmax=False,
                block_b=_DEFAULT_BLOCK_B, single_buffer_weights=False):
    """Run the fused MLP Pallas kernel.

    x:       (batch, *state_shape) float array
    params:  list of (W, b) with W: (in, out), b: (1, out)
    returns: (logits_f32, state=None) mirroring the PyTorch forward.
    """
    batch = x.shape[0]
    x2 = x.reshape(batch, -1)
    # Feed activations as bf16: the first MXU matmul truncates to bf16 anyway,
    # and this halves input DMA bytes / x-block VMEM vs staging in f32.
    if x2.dtype != jnp.bfloat16:
        x2 = x2.astype(jnp.bfloat16)
    in_dim = x2.shape[1]
    out_dim = params[-1][0].shape[1]

    # Lane-align feature dims to 128.
    in_dim_p = _round_up(in_dim, _LANE)
    out_dim_p = _round_up(out_dim, _LANE)
    layer_dims = [(_round_up(w.shape[0], _LANE), _round_up(w.shape[1], _LANE))
                  for (w, _) in params]

    weight_buffers = 1 if single_buffer_weights else 2
    blk = _choose_block(batch, in_dim_p, out_dim_p, layer_dims, block_b, weight_buffers)
    b_pad = _round_up(batch, blk)

    # Single fused pad of the input activations (batch rows + feature lanes).
    if b_pad != batch or in_dim_p != in_dim:
        x2 = jnp.pad(x2, ((0, b_pad - batch), (0, in_dim_p - in_dim)))

    # Zero-pad every layer's in/out features to 128 lanes (semantics-preserving
    # for Linear+ReLU). Weights -> bf16; biases stay f32 (added after f32 acc).
    padded_params = []
    for (w, b) in params:
        ki, ko = w.shape
        ki_p, ko_p = _round_up(ki, _LANE), _round_up(ko, _LANE)
        wp = w if (ki_p, ko_p) == (ki, ko) else jnp.pad(
            w, ((0, ki_p - ki), (0, ko_p - ko)))
        bp = b if b.shape[1] == ko_p else jnp.pad(b, ((0, 0), (0, ko_p - ko)))
        padded_params.append((wp.astype(jnp.bfloat16), bp.astype(jnp.float32)))

    grid = (b_pad // blk,)

    def _invariant_spec(shape):
        # Grid-invariant weight/bias blocks (same tile every step).
        if single_buffer_weights:
            # No prefetch-ahead needed for an invariant block -> halve its VMEM.
            return pl.BlockSpec(shape, lambda i: (0, 0), pipeline_mode=pl.Buffered(1))
        return pl.BlockSpec(shape, lambda i: (0, 0))

    in_specs = [pl.BlockSpec((blk, in_dim_p), lambda i: (i, 0))]
    flat_args = [x2]
    for (w, b) in padded_params:
        in_specs.append(_invariant_spec(w.shape))
        in_specs.append(_invariant_spec(b.shape))
        flat_args.append(w)
        flat_args.append(b)

    out_specs = pl.BlockSpec((blk, out_dim_p), lambda i: (i, 0))

    kernel = _make_mlp_kernel(tuple(relu_flags), softmax, out_dim, out_dim_p)

    vmem_needed = _vmem_bytes(blk, in_dim_p, out_dim_p, layer_dims, weight_buffers)
    vmem_limit = int(min(max(2 * vmem_needed, _VMEM_LIMIT_FLOOR), _VMEM_LIMIT_CAP))

    out = pl.pallas_call(
        kernel,
        out_shape=jax.ShapeDtypeStruct((b_pad, out_dim_p), jnp.bfloat16),
        grid_spec=pltpu.PrefetchScalarGridSpec(
            num_scalar_prefetch=0,
            grid=grid,
            in_specs=in_specs,
            out_specs=out_specs,
        ),
        compiler_params=pltpu.CompilerParams(
            # Batch axis is independent -> shard across TensorCores (v7x).
            dimension_semantics=("parallel",),
            vmem_limit_bytes=vmem_limit,
        ),
    )(*flat_args)

    # Trim padding and restore the module's float32 output dtype on the host.
    logits = out[:batch, :out_dim].astype(jnp.float32)
    return logits, None  # (logits, state) like the PyTorch module


def init_mlp_params(key, state_shape, layer_num, action_shape=0):
    """Deterministic synthetic init mirroring the PyTorch module's layer shapes."""
    in_dim = int(math.prod(state_shape))
    dims = [in_dim, 128]                 # first Linear + ReLU
    relu_flags = [True]
    for _ in range(layer_num):           # layer_num x (Linear(128,128) + ReLU)
        dims.append(128)
        relu_flags.append(True)
    if action_shape:                     # output head, no ReLU
        act_dim = action_shape if isinstance(action_shape, int) else int(
            math.prod(action_shape))
        dims.append(act_dim)
        relu_flags.append(False)

    params = []
    for li in range(len(dims) - 1):
        key, kw, kb = jax.random.split(key, 3)
        fan_in = dims[li]
        scale = 1.0 / math.sqrt(float(fan_in))
        w = jax.random.uniform(kw, (dims[li], dims[li + 1]), jnp.float32,
                               minval=-scale, maxval=scale)
        b = jax.random.uniform(kb, (1, dims[li + 1]), jnp.float32,
                               minval=-scale, maxval=scale)
        params.append((w, b))
    return params, relu_flags


def mlp_reference(x, params, relu_flags, softmax=False, matmul_dtype=jnp.float32):
    """Pure-JAX reference of the same forward pass (for verification)."""
    batch = x.shape[0]
    h = x.reshape(batch, -1).astype(jnp.float32)
    for (w, b), relu in zip(params, relu_flags):
        h = jnp.dot(h.astype(matmul_dtype), w.astype(matmul_dtype),
                    preferred_element_type=jnp.float32) + b
        if relu:
            h = jnp.maximum(h, 0.0)
    if softmax:
        h = jax.nn.softmax(h, axis=-1)
    return h


if __name__ == "__main__":
    # Config consistent with the module: state_shape=(4,16) -> 64 features,
    # layer_num=2, action_shape=8.
    state_shape = (4, 16)
    layer_num = 2
    action_shape = 8

    key = jax.random.PRNGKey(0)
    key, kx = jax.random.split(key)
    params, relu_flags = init_mlp_params(key, state_shape, layer_num, action_shape)

    # Two batch sizes: tiny (single grid step) and mid-size (exercises the
    # >=2-step grid split for v7x TC sharding plus row padding).
    for batch in (2, 300):
        kx, sub = jax.random.split(kx)
        x = jax.random.normal(sub, (batch,) + state_shape, jnp.float32)

        # --- module default: no softmax ---
        logits, state = mlp_forward(x, params, relu_flags, softmax=False)
        logits = jax.block_until_ready(logits)
        assert logits.shape == (batch, action_shape), logits.shape

        ref_bf16 = mlp_reference(x, params, relu_flags, softmax=False,
                                 matmul_dtype=jnp.bfloat16)
        assert jnp.allclose(logits, ref_bf16, atol=2e-2, rtol=2e-2), (
            batch, float(jnp.max(jnp.abs(logits - ref_bf16))))
        if batch == 2:
            # vs f32 (PyTorch-semantics) reference: tolerance sized for bf16 MXU.
            ref_f32 = mlp_reference(x, params, relu_flags, softmax=False)
            assert jnp.allclose(logits, ref_f32, atol=5e-2, rtol=5e-2), (
                float(jnp.max(jnp.abs(logits - ref_f32))))

        # --- softmax head (lane-pad masking + EUP approx reciprocal) ---
        probs, _ = mlp_forward(x, params, relu_flags, softmax=True)
        probs = jax.block_until_ready(probs)
        ref_sm = mlp_reference(x, params, relu_flags, softmax=True,
                               matmul_dtype=jnp.bfloat16)
        assert probs.shape == (batch, action_shape), probs.shape
        assert jnp.allclose(probs, ref_sm, atol=2e-2, rtol=2e-2), (
            batch, float(jnp.max(jnp.abs(probs - ref_sm))))
        assert jnp.allclose(jnp.sum(probs, axis=-1), 1.0, atol=1e-2)

    print("KERNEL_OK")
</pallas_src>

<mosaic_0001>
module attributes {stable_mosaic.version = 11 : i64} {
  func.func @kernel(%arg0: i32, %arg1: memref<16x128xbf16, #tpu.memory_space<vmem>>, %arg2: memref<128x128xbf16, #tpu.memory_space<vmem>>, %arg3: memref<1x128xf32, #tpu.memory_space<vmem>>, %arg4: memref<128x128xbf16, #tpu.memory_space<vmem>>, %arg5: memref<1x128xf32, #tpu.memory_space<vmem>>, %arg6: memref<128x128xbf16, #tpu.memory_space<vmem>>, %arg7: memref<1x128xf32, #tpu.memory_space<vmem>>, %arg8: memref<128x128xbf16, #tpu.memory_space<vmem>>, %arg9: memref<1x128xf32, #tpu.memory_space<vmem>>, %arg10: memref<16x128xbf16, #tpu.memory_space<vmem>>) attributes {dimension_semantics = [#tpu.dimension_semantics<parallel>], iteration_bounds = array<i64: 1>, scalar_prefetch = 0 : i64, scratch_operands = 0 : i64, tpu.core_type = #tpu.core_type<tc>, window_params = [{transform_indices = @transform_0, window_bounds = array<i64: 16, 128>}, {pipeline_mode = #tpu.pipeline_mode<synchronous>, transform_indices = @transform_1, window_bounds = array<i64: 128, 128>}, {pipeline_mode = #tpu.pipeline_mode<synchronous>, transform_indices = @transform_2, window_bounds = array<i64: 1, 128>}, {pipeline_mode = #tpu.pipeline_mode<synchronous>, transform_indices = @transform_3, window_bounds = array<i64: 128, 128>}, {pipeline_mode = #tpu.pipeline_mode<synchronous>, transform_indices = @transform_4, window_bounds = array<i64: 1, 128>}, {pipeline_mode = #tpu.pipeline_mode<synchronous>, transform_indices = @transform_5, window_bounds = array<i64: 128, 128>}, {pipeline_mode = #tpu.pipeline_mode<synchronous>, transform_indices = @transform_6, window_bounds = array<i64: 1, 128>}, {pipeline_mode = #tpu.pipeline_mode<synchronous>, transform_indices = @transform_7, window_bounds = array<i64: 128, 128>}, {pipeline_mode = #tpu.pipeline_mode<synchronous>, transform_indices = @transform_8, window_bounds = array<i64: 1, 128>}, {transform_indices = @transform_9, window_bounds = array<i64: 16, 128>}]} {
    %c0 = arith.constant 0 : index
    %c0_0 = arith.constant 0 : index
    %0 = vector.load %arg1[%c0, %c0_0] : memref<16x128xbf16, #tpu.memory_space<vmem>>, vector<16x128xbf16>
    %c0_1 = arith.constant 0 : index
    %c0_2 = arith.constant 0 : index
    %1 = vector.load %arg2[%c0_1, %c0_2] : memref<128x128xbf16, #tpu.memory_space<vmem>>, vector<128x128xbf16>
    %c0_3 = arith.constant 0 : index
    %c0_4 = arith.constant 0 : index
    %2 = vector.load %arg3[%c0_3, %c0_4] : memref<1x128xf32, #tpu.memory_space<vmem>>, vector<1x128xf32>
    %cst = arith.constant dense<0.000000e+00> : vector<16x128xf32>
    %3 = tpu.matmul %0, %1, %cst {dimension_numbers = #tpu.dot_dimension_numbers<[1], [0], [0], [1], [0, 0, 1, 1], [], []>} : vector<16x128xbf16>, vector<128x128xbf16>, vector<16x128xf32> -> vector<16x128xf32>
    %4 = vector.broadcast %2 : vector<1x128xf32> to vector<16x128xf32>
    %5 = arith.addf %3, %4 : vector<16x128xf32>
    %cst_5 = arith.constant 0.000000e+00 : f32
    %6 = vector.broadcast %cst_5 : f32 to vector<16x128xf32>
    %7 = arith.maximumf %5, %6 : vector<16x128xf32>
    %c0_6 = arith.constant 0 : index
    %c0_7 = arith.constant 0 : index
    %8 = vector.load %arg4[%c0_6, %c0_7] : memref<128x128xbf16, #tpu.memory_space<vmem>>, vector<128x128xbf16>
    %c0_8 = arith.constant 0 : index
    %c0_9 = arith.constant 0 : index
    %9 = vector.load %arg5[%c0_8, %c0_9] : memref<1x128xf32, #tpu.memory_space<vmem>>, vector<1x128xf32>
    %10 = arith.truncf %7 : vector<16x128xf32> to vector<16x128xbf16>
    %cst_10 = arith.constant dense<0.000000e+00> : vector<16x128xf32>
    %11 = tpu.matmul %10, %8, %cst_10 {dimension_numbers = #tpu.dot_dimension_numbers<[1], [0], [0], [1], [0, 0, 1, 1], [], []>} : vector<16x128xbf16>, vector<128x128xbf16>, vector<16x128xf32> -> vector<16x128xf32>
    %12 = vector.broadcast %9 : vector<1x128xf32> to vector<16x128xf32>
    %13 = arith.addf %11, %12 : vector<16x128xf32>
    %cst_11 = arith.constant 0.000000e+00 : f32
    %14 = vector.broadcast %cst_11 : f32 to vector<16x128xf32>
    %15 = arith.maximumf %13, %14 : vector<16x128xf32>
    %c0_12 = arith.constant 0 : index
    %c0_13 = arith.constant 0 : index
    %16 = vector.load %arg6[%c0_12, %c0_13] : memref<128x128xbf16, #tpu.memory_space<vmem>>, vector<128x128xbf16>
    %c0_14 = arith.constant 0 : index
    %c0_15 = arith.constant 0 : index
    %17 = vector.load %arg7[%c0_14, %c0_15] : memref<1x128xf32, #tpu.memory_space<vmem>>, vector<1x128xf32>
    %18 = arith.truncf %15 : vector<16x128xf32> to vector<16x128xbf16>
    %cst_16 = arith.constant dense<0.000000e+00> : vector<16x128xf32>
    %19 = tpu.matmul %18, %16, %cst_16 {dimension_numbers = #tpu.dot_dimension_numbers<[1], [0], [0], [1], [0, 0, 1, 1], [], []>} : vector<16x128xbf16>, vector<128x128xbf16>, vector<16x128xf32> -> vector<16x128xf32>
    %20 = vector.broadcast %17 : vector<1x128xf32> to vector<16x128xf32>
    %21 = arith.addf %19, %20 : vector<16x128xf32>
    %cst_17 = arith.constant 0.000000e+00 : f32
    %22 = vector.broadcast %cst_17 : f32 to vector<16x128xf32>
    %23 = arith.maximumf %21, %22 : vector<16x128xf32>
    %c0_18 = arith.constant 0 : index
    %c0_19 = arith.constant 0 : index
    %24 = vector.load %arg8[%c0_18, %c0_19] : memref<128x128xbf16, #tpu.memory_space<vmem>>, vector<128x128xbf16>
    %c0_20 = arith.constant 0 : index
    %c0_21 = arith.constant 0 : index
    %25 = vector.load %arg9[%c0_20, %c0_21] : memref<1x128xf32, #tpu.memory_space<vmem>>, vector<1x128xf32>
    %26 = arith.truncf %23 : vector<16x128xf32> to vector<16x128xbf16>
    %cst_22 = arith.constant dense<0.000000e+00> : vector<16x128xf32>
    %27 = tpu.matmul %26, %24, %cst_22 {dimension_numbers = #tpu.dot_dimension_numbers<[1], [0], [0], [1], [0, 0, 1, 1], [], []>} : vector<16x128xbf16>, vector<128x128xbf16>, vector<16x128xf32> -> vector<16x128xf32>
    %28 = vector.broadcast %25 : vector<1x128xf32> to vector<16x128xf32>
    %29 = arith.addf %27, %28 : vector<16x128xf32>
    %30 = arith.truncf %29 : vector<16x128xf32> to vector<16x128xbf16>
    %c0_23 = arith.constant 0 : index
    %c0_24 = arith.constant 0 : index
    %31 = vector.load %arg10[%c0_23, %c0_24] : memref<16x128xbf16, #tpu.memory_space<vmem>>, vector<16x128xbf16>
    tpu.vector_store %arg10[%c0_23, %c0_24], %30 {strides = array<i32>} : memref<16x128xbf16, #tpu.memory_space<vmem>>, vector<16x128xbf16>,
    return
  }
  func.func @transform_0(%arg0: i32) -> (i32, i32) {
    %c0_i32 = arith.constant 0 : i32
    %c0_i32_0 = arith.constant 0 : i32
    return %arg0, %c0_i32 : i32, i32
  }
  func.func @transform_1(%arg0: i32) -> (i32, i32) {
    %c0_i32 = arith.constant 0 : i32
    %c0_i32_0 = arith.constant 0 : i32
    %c0_i32_1 = arith.constant 0 : i32
    return %c0_i32, %c0_i32_0 : i32, i32
  }
  func.func @transform_2(%arg0: i32) -> (i32, i32) {
    %c0_i32 = arith.constant 0 : i32
    %c0_i32_0 = arith.constant 0 : i32
    %c0_i32_1 = arith.constant 0 : i32
    return %c0_i32, %c0_i32_0 : i32, i32
  }
  func.func @transform_3(%arg0: i32) -> (i32, i32) {
    %c0_i32 = arith.constant 0 : i32
    %c0_i32_0 = arith.constant 0 : i32
    %c0_i32_1 = arith.constant 0 : i32
    return %c0_i32, %c0_i32_0 : i32, i32
  }
  func.func @transform_4(%arg0: i32) -> (i32, i32) {
    %c0_i32 = arith.constant 0 : i32
    %c0_i32_0 = arith.constant 0 : i32
    %c0_i32_1 = arith.constant 0 : i32
    return %c0_i32, %c0_i32_0 : i32, i32
  }
  func.func @transform_5(%arg0: i32) -> (i32, i32) {
    %c0_i32 = arith.constant 0 : i32
    %c0_i32_0 = arith.constant 0 : i32
    %c0_i32_1 = arith.constant 0 : i32
    return %c0_i32, %c0_i32_0 : i32, i32
  }
  func.func @transform_6(%arg0: i32) -> (i32, i32) {
    %c0_i32 = arith.constant 0 : i32
    %c0_i32_0 = arith.constant 0 : i32
    %c0_i32_1 = arith.constant 0 : i32
    return %c0_i32, %c0_i32_0 : i32, i32
  }
  func.func @transform_7(%arg0: i32) -> (i32, i32) {
    %c0_i32 = arith.constant 0 : i32
    %c0_i32_0 = arith.constant 0 : i32
    %c0_i32_1 = arith.constant 0 : i32
    return %c0_i32, %c0_i32_0 : i32, i32
  }
  func.func @transform_8(%arg0: i32) -> (i32, i32) {
    %c0_i32 = arith.constant 0 : i32
    %c0_i32_0 = arith.constant 0 : i32
    %c0_i32_1 = arith.constant 0 : i32
    return %c0_i32, %c0_i32_0 : i32, i32
  }
  func.func @transform_9(%arg0: i32) -> (i32, i32) {
    %c0_i32 = arith.constant 0 : i32
    %c0_i32_0 = arith.constant 0 : i32
    return %arg0, %c0_i32 : i32, i32
  }
}

</mosaic_0001>

<llo_original>
// kernel: tpu_custom_call.1
$region0: #{tpu_custom_call.1}
  #allocation0 [shape = 'u32[]', space=smem, size = 0x4, offset = 0x4, fixed_abs, tag = 'smem constant byte address 0x4 - core index']
  #allocation1 [shape = 'u32[72,128]{1,0:T(1,128)}', space=vmem, size = 0x9000, scoped, tag = 'internal scratch']
  %s0 = inlined_call_operand.hbm [shape: bf16[16,128], index: 0, kind: input, shape index: {}]
  %s1 = inlined_call_operand.hbm [shape: bf16[128,128], index: 1, kind: input, shape index: {}]
  %s2 = inlined_call_operand.vmem [shape: f32[1,128], index: 2, kind: input, shape index: {}]
  %s3 = inlined_call_operand.hbm [shape: bf16[128,128], index: 3, kind: input, shape index: {}]
  %s4 = inlined_call_operand.vmem [shape: f32[1,128], index: 4, kind: input, shape index: {}]
  %s5 = inlined_call_operand.hbm [shape: bf16[128,128], index: 5, kind: input, shape index: {}]
  %s6 = inlined_call_operand.vmem [shape: f32[1,128], index: 6, kind: input, shape index: {}]
  %s7 = inlined_call_operand.hbm [shape: bf16[128,128], index: 7, kind: input, shape index: {}]
  %s8 = inlined_call_operand.vmem [shape: f32[1,128], index: 8, kind: input, shape index: {}]
  %s9 = inlined_call_operand.hbm [shape: bf16[16,128], index: 9, kind: output, shape index: {}]
  %s10 = sld [smem:[#allocation0]]
  $region66: #{tpu_custom_call.1} parent=0
    _
  %s12 = ssub.s32 1, %s10
  %s13 = scalar_select 0, %s12, %s10
  $region1: #{tpu_custom_call.1} parent=0
    #allocation2 [shape = 'u8[4096]{0}', space=vmem, size = 0x1000, scoped, tag = 'input window, operand 0, single buffered']
    #allocation3 [shape = 's32[1]{0}', space=sflag, size = 0x4, scoped, tag = 'scoped memory for tpu_custom_call.1']
    #allocation4 [shape = 's32[1]{0}', space=sflag, size = 0x4, scoped, tag = 'scoped memory for tpu_custom_call.1']
    #allocation5 [shape = 'u8[32768]{0}', space=vmem, size = 0x8000, scoped, tag = 'input window, operand 1, single buffered']
    #allocation6 [shape = 's32[1]{0}', space=sflag, size = 0x4, scoped, tag = 'scoped memory for tpu_custom_call.1']
    #allocation7 [shape = 'u8[32768]{0}', space=vmem, size = 0x8000, scoped, tag = 'input window, operand 3, single buffered']
    #allocation8 [shape = 'u8[32768]{0}', space=vmem, size = 0x8000, scoped, tag = 'input window, operand 5, single buffered']
    #allocation9 [shape = 's32[1]{0}', space=sflag, size = 0x4, scoped, tag = 'scoped memory for tpu_custom_call.1']
    #allocation10 [shape = 'u8[32768]{0}', space=vmem, size = 0x8000, scoped, tag = 'input window, operand 7, single buffered']
    #allocation11 [shape = 'u8[4096]{0}', space=vmem, size = 0x1000, scoped, tag = 'output window, operand 0, single buffered']
    %14 = vsyncpa [#allocation3], 0
    %15 = vsyncpa [#allocation6], 0
    %16 = vsyncpa [#allocation9], 0
    %17 = vsyncpa [#allocation4], 0
    // Predicated region
    $region2: #{tpu_custom_call.1} parent=1 // pred_check
      _
    $region3: #{tpu_custom_call.1} parent=1 // pred_check_branch
      %19 = sbr.rel (0) target = $region5
    $region4: #{tpu_custom_call.1} parent=1 // pred_region
      %21 = vsyncadd [#allocation3], 0
      %s22 = sshll.u32 %s0, 4
      %s23 = int_to_ptr.hbm [resolvable:$true] %s22
      %s24 = sshll.u32 [#allocation2], 4
      %s25 = int_to_ptr.vmem [resolvable:$true] %s24
      %30 = dma.hbm_to_vmem [thread:$0]  %s23, 128, %s25, [#allocation3], 64, 64, 4
    $region5: #{tpu_custom_call.1} parent=1 // pred_fallthru
      _
    // Predicated region
    $region6: #{tpu_custom_call.1} parent=1 // pred_check
      _
    $region7: #{tpu_custom_call.1} parent=1 // pred_check_branch
      %32 = sbr.rel (0) target = $region9
    $region8: #{tpu_custom_call.1} parent=1 // pred_region
      %34 = vsyncadd [#allocation6], 0
      %s35 = sshll.u32 %s1, 4
      %s36 = int_to_ptr.hbm [resolvable:$true] %s35
      %s37 = sshll.u32 [#allocation5], 4
      %s38 = int_to_ptr.vmem [resolvable:$true] %s37
      %43 = dma.hbm_to_vmem [thread:$0]  %s36, 1024, %s38, [#allocation6], 64, 64, 4
    $region9: #{tpu_custom_call.1} parent=1 // pred_fallthru
      _
    // Predicated region
    $region10: #{tpu_custom_call.1} parent=1 // pred_check
      _
    $region11: #{tpu_custom_call.1} parent=1 // pred_check_branch
      %45 = sbr.rel (0) target = $region13
    $region12: #{tpu_custom_call.1} parent=1 // pred_region
      _
    $region13: #{tpu_custom_call.1} parent=1 // pred_fallthru
      _
    // Predicated region
    $region14: #{tpu_custom_call.1} parent=1 // pred_check
      _
    $region15: #{tpu_custom_call.1} parent=1 // pred_check_branch
      %47 = sbr.rel (0) target = $region17
    $region16: #{tpu_custom_call.1} parent=1 // pred_region
      %49 = vsyncadd [#allocation6], 0
      %s50 = sshll.u32 %s3, 4
      %s51 = int_to_ptr.hbm [resolvable:$true] %s50
      %s52 = sshll.u32 [#allocation7], 4
      %s53 = int_to_ptr.vmem [resolvable:$true] %s52
      %58 = dma.hbm_to_vmem [thread:$0]  %s51, 1024, %s53, [#allocation6], 64, 64, 4
    $region17: #{tpu_custom_call.1} parent=1 // pred_fallthru
      _
    // Predicated region
    $region18: #{tpu_custom_call.1} parent=1 // pred_check
      _
    $region19: #{tpu_custom_call.1} parent=1 // pred_check_branch
      %60 = sbr.rel (0) target = $region21
    $region20: #{tpu_custom_call.1} parent=1 // pred_region
      _
    $region21: #{tpu_custom_call.1} parent=1 // pred_fallthru
      _
    // Predicated region
    $region22: #{tpu_custom_call.1} parent=1 // pred_check
      _
    $region23: #{tpu_custom_call.1} parent=1 // pred_check_branch
      %62 = sbr.rel (0) target = $region25
    $region24: #{tpu_custom_call.1} parent=1 // pred_region
      %64 = vsyncadd [#allocation9], 0
      %s65 = sshll.u32 %s5, 4
      %s66 = int_to_ptr.hbm [resolvable:$true] %s65
      %s67 = sshll.u32 [#allocation8], 4
      %s68 = int_to_ptr.vmem [resolvable:$true] %s67
      %73 = dma.hbm_to_vmem [thread:$0]  %s66, 1024, %s68, [#allocation9], 64, 64, 4
    $region25: #{tpu_custom_call.1} parent=1 // pred_fallthru
      _
    // Predicated region
    $region26: #{tpu_custom_call.1} parent=1 // pred_check
      _
    $region27: #{tpu_custom_call.1} parent=1 // pred_check_branch
      %75 = sbr.rel (0) target = $region29
    $region28: #{tpu_custom_call.1} parent=1 // pred_region
      _
    $region29: #{tpu_custom_call.1} parent=1 // pred_fallthru
      _
    // Predicated region
    $region30: #{tpu_custom_call.1} parent=1 // pred_check
      _
    $region31: #{tpu_custom_call.1} parent=1 // pred_check_branch
      %77 = sbr.rel (0) target = $region33
    $region32: #{tpu_custom_call.1} parent=1 // pred_region
      %79 = vsyncadd [#allocation9], 0
      %s80 = sshll.u32 %s7, 4
      %s81 = int_to_ptr.hbm [resolvable:$true] %s80
      %s82 = sshll.u32 [#allocation10], 4
      %s83 = int_to_ptr.vmem [resolvable:$true] %s82
      %88 = dma.hbm_to_vmem [thread:$0]  %s81, 1024, %s83, [#allocation9], 64, 64, 4
    $region33: #{tpu_custom_call.1} parent=1 // pred_fallthru
      _
    // Predicated region
    $region34: #{tpu_custom_call.1} parent=1 // pred_check
      _
    $region35: #{tpu_custom_call.1} parent=1 // pred_check_branch
      %90 = sbr.rel (0) target = $region37
    $region36: #{tpu_custom_call.1} parent=1 // pred_region
      _
    $region37: #{tpu_custom_call.1} parent=1 // pred_fallthru
      _
    // Predicated region
    $region38: #{tpu_custom_call.1} parent=1 // pred_check
      _
    $region39: #{tpu_custom_call.1} parent=1 // pred_check_branch
      %92 = sbr.rel (0) target = $region41
    $region40: #{tpu_custom_call.1} parent=1 // pred_region
      %94 = dma.done [#allocation3], 128
    $region41: #{tpu_custom_call.1} parent=1 // pred_fallthru
      _
    // Predicated region
    $region42: #{tpu_custom_call.1} parent=1 // pred_check
      _
    $region43: #{tpu_custom_call.1} parent=1 // pred_check_branch
      %96 = sbr.rel (0) target = $region45
    $region44: #{tpu_custom_call.1} parent=1 // pred_region
      %98 = dma.done [#allocation6], 1024
    $region45: #{tpu_custom_call.1} parent=1 // pred_fallthru
      _
    // Predicated region
    $region46: #{tpu_custom_call.1} parent=1 // pred_check
      _
    $region47: #{tpu_custom_call.1} parent=1 // pred_check_branch
      %100 = sbr.rel (0) target = $region49
    $region48: #{tpu_custom_call.1} parent=1 // pred_region
      %102 = dma.done [#allocation6], 1024
    $region49: #{tpu_custom_call.1} parent=1 // pred_fallthru
      _
    // Predicated region
    $region50: #{tpu_custom_call.1} parent=1 // pred_check
      _
    $region51: #{tpu_custom_call.1} parent=1 // pred_check_branch
      %104 = sbr.rel (0) target = $region53
    $region52: #{tpu_custom_call.1} parent=1 // pred_region
      %106 = dma.done [#allocation9], 1024
    $region53: #{tpu_custom_call.1} parent=1 // pred_fallthru
      _
    // Predicated region
    $region54: #{tpu_custom_call.1} parent=1 // pred_check
      _
    $region55: #{tpu_custom_call.1} parent=1 // pred_check_branch
      %108 = sbr.rel (0) target = $region57
    $region56: #{tpu_custom_call.1} parent=1 // pred_region
      %110 = dma.done [#allocation9], 1024
    $region57: #{tpu_custom_call.1} parent=1 // pred_fallthru
      _
    %v111 = vld [vmem:[#allocation2] sm:$0xf]
    %v112 = vld [vmem:[#allocation2 + $0x4] sm:$0xf]
    %v113 = vld [vmem:[#allocation5] sm:$0xf]
    %v114 = vld [vmem:[#allocation5 + $0x4] sm:$0xf]
    %v115 = vld [vmem:[#allocation5 + $0x8] sm:$0xf]
    %v116 = vld [vmem:[#allocation5 + $0xc] sm:$0xf]
    %v117 = vld [vmem:[#allocation5 + $0x10] sm:$0xf]
    %v118 = vld [vmem:[#allocation5 + $0x14] sm:$0xf]
    %v119 = vld [vmem:[#allocation5 + $0x18] sm:$0xf]
    %v120 = vld [vmem:[#allocation5 + $0x1c] sm:$0xf]
    %v121 = vld [vmem:[#allocation5 + $0x20] sm:$0xf]
    %v122 = vld [vmem:[#allocation5 + $0x24] sm:$0xf]
    %v123 = vld [vmem:[#allocation5 + $0x28] sm:$0xf]
    %v124 = vld [vmem:[#allocation5 + $0x2c] sm:$0xf]
    %v125 = vld [vmem:[#allocation5 + $0x30] sm:$0xf]
    %v126 = vld [vmem:[#allocation5 + $0x34] sm:$0xf]
    %v127 = vld [vmem:[#allocation5 + $0x38] sm:$0xf]
    %v128 = vld [vmem:[#allocation5 + $0x3c] sm:$0xf]
    %v129 = vld [vmem:[%s2] sm:$0x1]
    %v131 = vperm.slane %v129, 0
    %v135 = vunpack.c.l.b16 %v111
    %v136 = vunpack.c.l.b16 %v112
    %v137 = vpack.c.b16 %v136, %v135
    %v155 = vunpack.c.l.b16 %v113
    %v156 = vunpack.c.l.b16 %v114
    %v157 = vunpack.c.l.b16 %v115
    %v158 = vunpack.c.l.b16 %v116
    %v159 = vunpack.c.l.b16 %v117
    %v160 = vunpack.c.l.b16 %v118
    %v161 = vunpack.c.l.b16 %v119
    %v162 = vunpack.c.l.b16 %v120
    %v163 = vunpack.c.l.b16 %v121
    %v164 = vunpack.c.l.b16 %v122
    %v165 = vunpack.c.l.b16 %v123
    %v166 = vunpack.c.l.b16 %v124
    %v167 = vunpack.c.l.b16 %v125
    %v168 = vunpack.c.l.b16 %v126
    %v169 = vunpack.c.l.b16 %v127
    %v170 = vunpack.c.l.b16 %v128
    %v171 = vpack.c.b16 %v156, %v155
    %v172 = vpack.c.b16 %v158, %v157
    %v173 = vpack.c.b16 %v160, %v159
    %v174 = vpack.c.b16 %v162, %v161
    %v175 = vpack.c.b16 %v164, %v163
    %v176 = vpack.c.b16 %v166, %v165
    %v177 = vpack.c.b16 %v168, %v167
    %v178 = vpack.c.b16 %v170, %v169
    %187 = vmatpush.bf16.msra.mxu0 %v178
    %188 = vmatpush.bf16.msra.mxu0 %v177
    %189 = vmatpush.bf16.msra.mxu0 %v176
    %190 = vmatpush.bf16.msra.mxu0 %v175
    %191 = vmatpush.bf16.msra.mxu0 %v174
    %192 = vmatpush.bf16.msra.mxu0 %v173
    %193 = vmatpush.bf16.msra.mxu0 %v172
    %194 = vmatpush.bf16.msra.mxu0 %v171
    %195 = vmatmul.bf16.gmra.mxu0 %v137
    %v196 = vpop.f32.mrf.mxu0
    %v197 = vadd.f32 %v131, %v196
    %v198 = vpop.f32.mrf.mxu0
    %v199 = vadd.f32 %v131, %v198
    %200 = vdwg.mxu0
    %v201 = vmax.f32 %v197, 0.0
    %v202 = vmax.f32 %v199, 0.0
    %v203 = vld [vmem:[#allocation7] sm:$0xf]
    %v204 = vld [vmem:[#allocation7 + $0x4] sm:$0xf]
    %v205 = vld [vmem:[#allocation7 + $0x8] sm:$0xf]
    %v206 = vld [vmem:[#allocation7 + $0xc] sm:$0xf]
    %v207 = vld [vmem:[#allocation7 + $0x10] sm:$0xf]
    %v208 = vld [vmem:[#allocation7 + $0x14] sm:$0xf]
    %v209 = vld [vmem:[#allocation7 + $0x18] sm:$0xf]
    %v210 = vld [vmem:[#allocation7 + $0x1c] sm:$0xf]
    %v211 = vld [vmem:[#allocation7 + $0x20] sm:$0xf]
    %v212 = vld [vmem:[#allocation7 + $0x24] sm:$0xf]
    %v213 = vld [vmem:[#allocation7 + $0x28] sm:$0xf]
    %v214 = vld [vmem:[#allocation7 + $0x2c] sm:$0xf]
    %v215 = vld [vmem:[#allocation7 + $0x30] sm:$0xf]
    %v216 = vld [vmem:[#allocation7 + $0x34] sm:$0xf]
    %v217 = vld [vmem:[#allocation7 + $0x38] sm:$0xf]
    %v218 = vld [vmem:[#allocation7 + $0x3c] sm:$0xf]
    %v219 = vld [vmem:[%s4] sm:$0x1]
    %v220 = vpack.c.bf16 %v202, %v201
    %v222 = vperm.slane %v219, 0
    %v240 = vunpack.c.l.b16 %v203
    %v241 = vunpack.c.l.b16 %v204
    %v242 = vunpack.c.l.b16 %v205
    %v243 = vunpack.c.l.b16 %v206
    %v244 = vunpack.c.l.b16 %v207
    %v245 = vunpack.c.l.b16 %v208
    %v246 = vunpack.c.l.b16 %v209
    %v247 = vunpack.c.l.b16 %v210
    %v248 = vunpack.c.l.b16 %v211
    %v249 = vunpack.c.l.b16 %v212
    %v250 = vunpack.c.l.b16 %v213
    %v251 = vunpack.c.l.b16 %v214
    %v252 = vunpack.c.l.b16 %v215
    %v253 = vunpack.c.l.b16 %v216
    %v254 = vunpack.c.l.b16 %v217
    %v255 = vunpack.c.l.b16 %v218
    %v256 = vpack.c.b16 %v241, %v240
    %v257 = vpack.c.b16 %v243, %v242
    %v258 = vpack.c.b16 %v245, %v244
    %v259 = vpack.c.b16 %v247, %v246
    %v260 = vpack.c.b16 %v249, %v248
    %v261 = vpack.c.b16 %v251, %v250
    %v262 = vpack.c.b16 %v253, %v252
    %v263 = vpack.c.b16 %v255, %v254
    %272 = vmatpush.bf16.msra.mxu0 %v263
    %273 = vmatpush.bf16.msra.mxu0 %v262
    %274 = vmatpush.bf16.msra.mxu0 %v261
    %275 = vmatpush.bf16.msra.mxu0 %v260
    %276 = vmatpush.bf16.msra.mxu0 %v259
    %277 = vmatpush.bf16.msra.mxu0 %v258
    %278 = vmatpush.bf16.msra.mxu0 %v257
    %279 = vmatpush.bf16.msra.mxu0 %v256
    %280 = vmatmul.bf16.gmra.mxu0 %v220
    %v281 = vpop.f32.mrf.mxu0
    %v282 = vadd.f32 %v222, %v281
    %v283 = vpop.f32.mrf.mxu0
    %v284 = vadd.f32 %v222, %v283
    %285 = vdwg.mxu0
    %v286 = vmax.f32 %v282, 0.0
    %v287 = vmax.f32 %v284, 0.0
    %v288 = vld [vmem:[#allocation8] sm:$0xf]
    %v289 = vld [vmem:[#allocation8 + $0x4] sm:$0xf]
    %v290 = vld [vmem:[#allocation8 + $0x8] sm:$0xf]
    %v291 = vld [vmem:[#allocation8 + $0xc] sm:$0xf]
    %v292 = vld [vmem:[#allocation8 + $0x10] sm:$0xf]
    %v293 = vld [vmem:[#allocation8 + $0x14] sm:$0xf]
    %v294 = vld [vmem:[#allocation8 + $0x18] sm:$0xf]
    %v295 = vld [vmem:[#allocation8 + $0x1c] sm:$0xf]
    %v296 = vld [vmem:[#allocation8 + $0x20] sm:$0xf]
    %v297 = vld [vmem:[#allocation8 + $0x24] sm:$0xf]
    %v298 = vld [vmem:[#allocation8 + $0x28] sm:$0xf]
    %v299 = vld [vmem:[#allocation8 + $0x2c] sm:$0xf]
    %v300 = vld [vmem:[#allocation8 + $0x30] sm:$0xf]
    %v301 = vld [vmem:[#allocation8 + $0x34] sm:$0xf]
    %v302 = vld [vmem:[#allocation8 + $0x38] sm:$0xf]
    %v303 = vld [vmem:[#allocation8 + $0x3c] sm:$0xf]
    %v304 = vld [vmem:[%s6] sm:$0x1]
    %v305 = vpack.c.bf16 %v287, %v286
    %v307 = vperm.slane %v304, 0
    %v325 = vunpack.c.l.b16 %v288
    %v326 = vunpack.c.l.b16 %v289
    %v327 = vunpack.c.l.b16 %v290
    %v328 = vunpack.c.l.b16 %v291
    %v329 = vunpack.c.l.b16 %v292
    %v330 = vunpack.c.l.b16 %v293
    %v331 = vunpack.c.l.b16 %v294
    %v332 = vunpack.c.l.b16 %v295
    %v333 = vunpack.c.l.b16 %v296
    %v334 = vunpack.c.l.b16 %v297
    %v335 = vunpack.c.l.b16 %v298
    %v336 = vunpack.c.l.b16 %v299
    %v337 = vunpack.c.l.b16 %v300
    %v338 = vunpack.c.l.b16 %v301
    %v339 = vunpack.c.l.b16 %v302
    %v340 = vunpack.c.l.b16 %v303
    %v341 = vpack.c.b16 %v326, %v325
    %v342 = vpack.c.b16 %v328, %v327
    %v343 = vpack.c.b16 %v330, %v329
    %v344 = vpack.c.b16 %v332, %v331
    %v345 = vpack.c.b16 %v334, %v333
    %v346 = vpack.c.b16 %v336, %v335
    %v347 = vpack.c.b16 %v338, %v337
    %v348 = vpack.c.b16 %v340, %v339
    %357 = vmatpush.bf16.msra.mxu0 %v348
    %358 = vmatpush.bf16.msra.mxu0 %v347
    %359 = vmatpush.bf16.msra.mxu0 %v346
    %360 = vmatpush.bf16.msra.mxu0 %v345
    %361 = vmatpush.bf16.msra.mxu0 %v344
    %362 = vmatpush.bf16.msra.mxu0 %v343
    %363 = vmatpush.bf16.msra.mxu0 %v342
    %364 = vmatpush.bf16.msra.mxu0 %v341
    %365 = vmatmul.bf16.gmra.mxu0 %v305
    %v366 = vpop.f32.mrf.mxu0
    %v367 = vadd.f32 %v307, %v366
    %v368 = vpop.f32.mrf.mxu0
    %v369 = vadd.f32 %v307, %v368
    %370 = vdwg.mxu0
    %v371 = vmax.f32 %v367, 0.0
    %v372 = vmax.f32 %v369, 0.0
    %v373 = vld [vmem:[#allocation10] sm:$0xf]
    %v374 = vld [vmem:[#allocation10 + $0x4] sm:$0xf]
    %v375 = vld [vmem:[#allocation10 + $0x8] sm:$0xf]
    %v376 = vld [vmem:[#allocation10 + $0xc] sm:$0xf]
    %v377 = vld [vmem:[#allocation10 + $0x10] sm:$0xf]
    %v378 = vld [vmem:[#allocation10 + $0x14] sm:$0xf]
    %v379 = vld [vmem:[#allocation10 + $0x18] sm:$0xf]
    %v380 = vld [vmem:[#allocation10 + $0x1c] sm:$0xf]
    %v381 = vld [vmem:[#allocation10 + $0x20] sm:$0xf]
    %v382 = vld [vmem:[#allocation10 + $0x24] sm:$0xf]
    %v383 = vld [vmem:[#allocation10 + $0x28] sm:$0xf]
    %v384 = vld [vmem:[#allocation10 + $0x2c] sm:$0xf]
    %v385 = vld [vmem:[#allocation10 + $0x30] sm:$0xf]
    %v386 = vld [vmem:[#allocation10 + $0x34] sm:$0xf]
    %v387 = vld [vmem:[#allocation10 + $0x38] sm:$0xf]
    %v388 = vld [vmem:[#allocation10 + $0x3c] sm:$0xf]
    %v389 = vld [vmem:[%s8] sm:$0x1]
    %v390 = vpack.c.bf16 %v372, %v371
    %v392 = vperm.slane %v389, 0
    %v410 = vunpack.c.l.b16 %v373
    %v411 = vunpack.c.l.b16 %v374
    %v412 = vunpack.c.l.b16 %v375
    %v413 = vunpack.c.l.b16 %v376
    %v414 = vunpack.c.l.b16 %v377
    %v415 = vunpack.c.l.b16 %v378
    %v416 = vunpack.c.l.b16 %v379
    %v417 = vunpack.c.l.b16 %v380
    %v418 = vunpack.c.l.b16 %v381
    %v419 = vunpack.c.l.b16 %v382
    %v420 = vunpack.c.l.b16 %v383
    %v421 = vunpack.c.l.b16 %v384
    %v422 = vunpack.c.l.b16 %v385
    %v423 = vunpack.c.l.b16 %v386
    %v424 = vunpack.c.l.b16 %v387
    %v425 = vunpack.c.l.b16 %v388
    %v426 = vpack.c.b16 %v411, %v410
    %v427 = vpack.c.b16 %v413, %v412
    %v428 = vpack.c.b16 %v415, %v414
    %v429 = vpack.c.b16 %v417, %v416
    %v430 = vpack.c.b16 %v419, %v418
    %v431 = vpack.c.b16 %v421, %v420
    %v432 = vpack.c.b16 %v423, %v422
    %v433 = vpack.c.b16 %v425, %v424
    %442 = vmatpush.bf16.msra.mxu0 %v433
    %443 = vmatpush.bf16.msra.mxu0 %v432
    %444 = vmatpush.bf16.msra.mxu0 %v431
    %445 = vmatpush.bf16.msra.mxu0 %v430
    %446 = vmatpush.bf16.msra.mxu0 %v429
    %447 = vmatpush.bf16.msra.mxu0 %v428
    %448 = vmatpush.bf16.msra.mxu0 %v427
    %449 = vmatpush.bf16.msra.mxu0 %v426
    %450 = vmatmul.bf16.gmra.mxu0 %v390
    %v451 = vpop.f32.mrf.mxu0
    %v452 = vadd.f32 %v392, %v451
    %v453 = vpop.f32.mrf.mxu0
    %v454 = vadd.f32 %v392, %v453
    %455 = vdwg.mxu0
    %v456 = vpack.c.bf16 %v452, %v452
    %v457 = vpack.c.bf16 %v454, %v454
    %458 = vst [vmem:[#allocation11] sm:$0xf] %v456
    %459 = vst [vmem:[#allocation11 + $0x4] sm:$0xf] %v457
    // Predicated region
    $region58: #{tpu_custom_call.1} parent=1 // pred_check
      _
    $region59: #{tpu_custom_call.1} parent=1 // pred_check_branch
      %461 = sbr.rel (0) target = $region61
    $region60: #{tpu_custom_call.1} parent=1 // pred_region
      %463 = vsyncadd [#allocation4], 0
      %s464 = sshll.u32 [#allocation11], 4
      %s465 = int_to_ptr.vmem [resolvable:$true] %s464
      %s466 = sshll.u32 %s9, 4
      %s467 = int_to_ptr.hbm [resolvable:$true] %s466
      %472 = dma.vmem_to_hbm [thread:$0]  %s465, 128, %s467, [#allocation4], 64, 64, 4
    $region61: #{tpu_custom_call.1} parent=1 // pred_fallthru
      _
    // Predicated region
    $region62: #{tpu_custom_call.1} parent=1 // pred_check
      _
    $region63: #{tpu_custom_call.1} parent=1 // pred_check_branch
      %474 = sbr.rel (0) target = $region65
    $region64: #{tpu_custom_call.1} parent=1 // pred_region
      %476 = dma.done [#allocation4], 128
    $region65: #{tpu_custom_call.1} parent=1 // pred_fallthru
      _
    %477 = vsyncpa [#allocation3], 1
    %478 = vsyncpa [#allocation6], 1
    %479 = vsyncpa [#allocation9], 1
    %480 = vsyncpa [#allocation4], 1

</llo_original>
